<compile_context>
chip_gen: v5e
topology: v5e:2x2
jax: 0.10.0
libtpu: 0.0.40
codegen_flags: <defaults>
</compile_context>

<pallas_src>
from functools import partial

import numpy as np
import jax
import jax.numpy as jnp
from jax import lax
from jax.experimental import pallas as pl
from jax.experimental.pallas import tpu as pltpu


_CP = pltpu.CompilerParams(dimension_semantics=("arbitrary",))


def _full_spec(*shape):
    n = len(shape)
    return pl.BlockSpec(shape, lambda i, _n=n: (0,) * _n)


# ----------------------------------------------------------------------------
# Pallas kernels
# ----------------------------------------------------------------------------
def _matmul_bias_kernel(x_ref, w_ref, b_ref, o_ref):
    o_ref[...] = (jnp.dot(x_ref[...], w_ref[...],
                          preferred_element_type=jnp.float32) + b_ref[...])


def linear(x, w, b=None):
    """y = x @ w + b on the MXU (bf16 operands, f32 accumulation)."""
    M, K = x.shape
    N = w.shape[1]
    if b is None:
        b = jnp.zeros((N,), jnp.float32)
    return pl.pallas_call(
        _matmul_bias_kernel,
        out_shape=jax.ShapeDtypeStruct((M, N), jnp.float32),
        grid=(1,),
        in_specs=[_full_spec(M, K), _full_spec(K, N), _full_spec(1, N)],
        out_specs=_full_spec(M, N),
        compiler_params=_CP,
    )(x.astype(jnp.bfloat16), w.astype(jnp.bfloat16),
      b.reshape(1, N).astype(jnp.float32))


def _conv_encode_kernel(x_ref, w_ref, b_ref, o_ref, *, ns, ln):
    # x rows are ordered position-major: row l*ns + s is conv window l of sentence s,
    # so the length max-pool is ln-1 elementwise maxes over static sublane slices.
    y = jnp.dot(x_ref[...], w_ref[...], preferred_element_type=jnp.float32) + b_ref[...]
    y = jnp.maximum(y, 0.0)                                  # ReLU
    acc = y[0:ns]
    for l in range(1, ln):                                   # max-pool over length
        acc = jnp.maximum(acc, y[l * ns:(l + 1) * ns])
    o_ref[...] = acc


def im2col_k3(x):
    # x: [Ns, L, E] -> [Ns, L, 3E]  (same-padding conv, kernel size 3)
    pad = jnp.pad(x, ((0, 0), (1, 1), (0, 0)))
    return jnp.concatenate([pad[:, :-2], pad[:, 1:-1], pad[:, 2:]], axis=-1)


def conv_encode(sw_emb, w, b):
    """sentEncoder hot path: conv(k=3)+ReLU+max-pool for ALL sentences, one grid step."""
    Ns, L, E = sw_emb.shape
    KE = 3 * E
    # im2col, then flatten position-major so the in-kernel pool uses static slices.
    x = im2col_k3(sw_emb).transpose(1, 0, 2).reshape(L * Ns, KE)
    # TODO(synk): padded/short sentences still participate in the max (no length mask),
    #             matching the dense toy setup, not pack_padded behavior.
    return pl.pallas_call(
        partial(_conv_encode_kernel, ns=Ns, ln=L),
        out_shape=jax.ShapeDtypeStruct((Ns, E), jnp.float32),
        grid=(1,),
        in_specs=[_full_spec(L * Ns, KE), _full_spec(KE, E), _full_spec(1, E)],
        out_specs=_full_spec(Ns, E),
        compiler_params=_CP,
    )(x.astype(jnp.bfloat16), w.astype(jnp.bfloat16),
      b.reshape(1, E).astype(jnp.float32))


def _sent_feature_kernel(a_ref, wa_ref, b_ref, wb_ref, bias_ref, o_ref):
    # sent_feature = (ngram+pos) @ Wa + lstm_out @ Wb + bias  (three linears folded)
    o_ref[...] = (jnp.dot(a_ref[...], wa_ref[...], preferred_element_type=jnp.float32)
                  + jnp.dot(b_ref[...], wb_ref[...], preferred_element_type=jnp.float32)
                  + bias_ref[...])


def sent_feature_fused(cnn_in, wa, lstm_in, wb, bias):
    M, Ka = cnn_in.shape
    Kb = lstm_in.shape[1]
    H = wa.shape[1]
    return pl.pallas_call(
        _sent_feature_kernel,
        out_shape=jax.ShapeDtypeStruct((M, H), jnp.float32),
        grid=(1,),
        in_specs=[_full_spec(M, Ka), _full_spec(Ka, H),
                  _full_spec(M, Kb), _full_spec(Kb, H), _full_spec(1, H)],
        out_specs=_full_spec(M, H),
        compiler_params=_CP,
    )(cnn_in.astype(jnp.bfloat16), wa.astype(jnp.bfloat16),
      lstm_in.astype(jnp.bfloat16), wb.astype(jnp.bfloat16),
      bias.reshape(1, H).astype(jnp.float32))


def _doc_feature_kernel(p_ref, x_ref, w_ref, o_ref):
    pooled = jnp.dot(p_ref[...], x_ref[...], preferred_element_type=jnp.float32)
    o_ref[...] = jnp.dot(pooled.astype(jnp.bfloat16), w_ref[...],
                         preferred_element_type=jnp.float32)


def doc_feature_fused(pool, sent_feature, w):
    Nd, Ns = pool.shape
    H_in = sent_feature.shape[1]
    H = w.shape[1]
    return pl.pallas_call(
        _doc_feature_kernel,
        out_shape=jax.ShapeDtypeStruct((Nd, H), jnp.float32),
        grid=(1,),
        in_specs=[_full_spec(Nd, Ns), _full_spec(Ns, H_in), _full_spec(H_in, H)],
        out_specs=_full_spec(Nd, H),
        compiler_params=_CP,
    )(pool.astype(jnp.bfloat16), sent_feature.astype(jnp.bfloat16),
      w.astype(jnp.bfloat16))


def _wswgat_kernel(src_ref, dst_ref, wsrc_ref, asrc_ref, adst_ref, bias_ref,
                   w1_ref, b1_ref, w2_ref, b2_ref, g_ref, beta_ref, o_ref,
                   *, nhead, dh):
    # Source projection (bf16 MXU, f32 acc); zs doubles as the per-head value matrix.
    zs = jnp.dot(src_ref[...], wsrc_ref[...], preferred_element_type=jnp.float32)
    dst = dst_ref[...]
    asrc = asrc_ref[...]          # (nhead, Nsrc)
    adst = adst_ref[...]          # (Ndst, nhead)
    bias = bias_ref[...]          # (nhead, Ndst, Nsrc): edge bucket bias + (mask-1)*1e9
    heads = []
    for h in range(nhead):
        # logits oriented (Ndst, Nsrc): softmax reduces over the lane axis and the
        # aggregation below is attn @ v with no transpose.
        logits = adst[:, h:h + 1] + asrc[h:h + 1, :] + bias[h]
        logits = jnp.where(logits > 0, logits, 0.2 * logits)           # leaky_relu
        m = jnp.max(logits, axis=-1, keepdims=True)
        e = jnp.exp(logits - m)                                        # masked -> exactly 0
        denom = jnp.maximum(jnp.sum(e, axis=-1, keepdims=True), 1e-9)
        attn = e * pl.reciprocal(denom, approx=True)                   # EUP reciprocal
        v_h = zs[:, h * dh:(h + 1) * dh]
        heads.append(jnp.dot(attn.astype(jnp.bfloat16), v_h.astype(jnp.bfloat16),
                             preferred_element_type=jnp.float32))
    neighbor = jnp.concatenate(heads, axis=-1)                         # lane-dense (Ndst, nhead*dh)

    # Residual ELU + position-wise FFN + LayerNorm, fused epilogue (single store).
    hres = dst + neighbor
    hres = jnp.where(hres > 0, hres, jnp.exp(hres) - 1.0)              # ELU
    inner = jnp.dot(hres.astype(jnp.bfloat16), w1_ref[...],
                    preferred_element_type=jnp.float32) + b1_ref[...]
    inner = jnp.maximum(inner, 0.0)                                    # ReLU
    ffn = jnp.dot(inner.astype(jnp.bfloat16), w2_ref[...],
                  preferred_element_type=jnp.float32) + b2_ref[...]
    y = ffn + hres
    mu = jnp.mean(y, axis=-1, keepdims=True)
    var = jnp.mean((y - mu) * (y - mu), axis=-1, keepdims=True)
    o_ref[...] = (y - mu) * lax.rsqrt(var + 1e-6) * g_ref[...] + beta_ref[...]


def wswgat(p, src_state, dst_state, bias, nhead):
    """One fused WSWGAT layer: masked multi-head GAT + residual ELU + FFN + LayerNorm."""
    Nsrc, Din = src_state.shape
    Ndst, Dout = dst_state.shape
    dh = Dout // nhead
    ffn_dim = p['ffn_w1'].shape[1]

    # Fold the per-head attention vectors into block-diagonal (D, nhead) matrices; the
    # per-head scalar scores are tiny host-side matmuls already oriented (nhead, Nsrc)
    # and (Ndst, nhead), so the kernel never transposes.
    eye = jnp.eye(nhead, dtype=jnp.float32)
    A_src = (p['a_src'][:, :, None] * eye[:, None, :]).reshape(Dout, nhead)
    A_dst = (p['a_dst'][:, :, None] * eye[:, None, :]).reshape(Dout, nhead)
    asrc_t = (src_state @ (p['W_src'] @ A_src)).T             # (nhead, Nsrc)
    adst = dst_state @ (p['W_dst'] @ A_dst)                   # (Ndst, nhead)

    return pl.pallas_call(
        partial(_wswgat_kernel, nhead=nhead, dh=dh),
        out_shape=jax.ShapeDtypeStruct((Ndst, Dout), jnp.float32),
        grid=(1,),
        in_specs=[_full_spec(Nsrc, Din), _full_spec(Ndst, Dout), _full_spec(Din, Dout),
                  _full_spec(nhead, Nsrc), _full_spec(Ndst, nhead),
                  _full_spec(nhead, Ndst, Nsrc),
                  _full_spec(Dout, ffn_dim), _full_spec(1, ffn_dim),
                  _full_spec(ffn_dim, Dout), _full_spec(1, Dout),
                  _full_spec(1, Dout), _full_spec(1, Dout)],
        out_specs=_full_spec(Ndst, Dout),
        compiler_params=_CP,
    )(src_state.astype(jnp.bfloat16), dst_state.astype(jnp.float32),
      p['W_src'].astype(jnp.bfloat16),
      asrc_t.astype(jnp.float32), adst.astype(jnp.float32), bias.astype(jnp.float32),
      p['ffn_w1'].astype(jnp.bfloat16), p['ffn_b1'].reshape(1, ffn_dim).astype(jnp.float32),
      p['ffn_w2'].astype(jnp.bfloat16), p['ffn_b2'].reshape(1, Dout).astype(jnp.float32),
      p['ln_g'].reshape(1, Dout).astype(jnp.float32),
      p['ln_b'].reshape(1, Dout).astype(jnp.float32))


# ----------------------------------------------------------------------------
# JAX glue (embedding gathers, LSTM recurrence)
# ----------------------------------------------------------------------------
def bilstm(x, p):
    """Bidirectional single-layer LSTM over [B, S, E] -> [B, S, 2*h]."""
    B, S, E = x.shape
    hdim = p['Whh_f'].shape[0]
    # Fused fw/bw input projections: one lane-dense (8*hdim) Pallas matmul, then split.
    Wih = jnp.concatenate([p['Wih_f'], p['Wih_b']], axis=1)
    bih = jnp.concatenate([p['b_f'], p['b_b']])
    xp = linear(x.reshape(B * S, E), Wih, bih).reshape(B, S, 8 * hdim)
    xp_f, xp_b = xp[..., :4 * hdim], xp[..., 4 * hdim:]

    # TODO(synk): pack_padded_sequence / variable-length docs not modeled; the recurrent
    # step (sequential dependence) stays in lax.scan.
    def run(xp_dir, Whh, reverse):
        if reverse:
            xp_dir = xp_dir[:, ::-1]

        def step(carry, xt):
            h, c = carry
            gates = xt + h @ Whh
            i, f, g, o = jnp.split(gates, 4, axis=-1)
            c = jax.nn.sigmoid(f) * c + jax.nn.sigmoid(i) * jnp.tanh(g)
            h = jax.nn.sigmoid(o) * jnp.tanh(c)
            return (h, c), h

        init = (jnp.zeros((B, hdim), jnp.float32), jnp.zeros((B, hdim), jnp.float32))
        _, hs = lax.scan(step, init, jnp.swapaxes(xp_dir, 0, 1))
        hs = jnp.swapaxes(hs, 0, 1)
        if reverse:
            hs = hs[:, ::-1]
        return hs

    fw = run(xp_f, p['Whh_f'], False)
    bw = run(xp_b, p['Whh_b'], True)
    return jnp.concatenate([fw, bw], axis=-1)


def get_sinusoid_encoding_table(n_position, d_hid, padding_idx=0):
    pos = np.arange(n_position)[:, None].astype(np.float64)
    i = np.arange(d_hid)[None, :]
    angle = pos / np.power(10000.0, 2 * (i // 2) / d_hid)
    table = np.zeros((n_position, d_hid))
    table[:, 0::2] = np.sin(angle[:, 0::2])
    table[:, 1::2] = np.cos(angle[:, 1::2])
    table[padding_idx] = 0.0
    return jnp.asarray(table, jnp.float32)


# ----------------------------------------------------------------------------
# HSumDocGraph forward
# ----------------------------------------------------------------------------
def hsum_doc_graph_forward(params, graph, n_iter):
    wid = graph['wid']
    sent_words = graph['sent_words']
    sent_pos = graph['sent_pos']
    mask_wsup = graph['mask_wsup']          # [Nw, Nsup]   word -> (sent|doc) edges
    tffrac_wsup = graph['tffrac_wsup']      # [Nw, Nsup]   tf-idf bucket per edge
    doc_pool = graph['doc_pool']            # [Nd, Ns]     mean-pool matrix
    doc_of_sent = graph['doc_of_sent']      # [Ns]
    Ns = sent_words.shape[0]
    Nd = doc_pool.shape[0]

    # --- set_wnfeature: word embeddings ---------------------------------------
    word_feature = params['embed'][wid]                          # [Nw, E]

    # Edge tf-idf attention bias per direction, premasked and oriented (dst, src):
    # (nhead, 10) bucket table gather replaces the (N, N, Fe) edge-embedding tensor,
    # and the -1e9 mask penalty is folded in so the GAT kernel has no mask input.
    bucket_w2s = params['w2s']['a_edge'] @ params['TFembed'].T   # (h_w2s, 10)
    bucket_s2w = params['s2w']['a_edge'] @ params['TFembed'].T   # (h_s2w, 10)
    bias_w2s = bucket_w2s[:, tffrac_wsup.T] + (mask_wsup.T - 1.0)[None] * 1e9  # (h, Nsup, Nw)
    bias_s2w = bucket_s2w[:, tffrac_wsup] + (mask_wsup - 1.0)[None] * 1e9      # (h, Nw, Nsup)

    # --- set_snfeature: sentEncoder CNN + position embed + BiLSTM -------------
    sw_emb = params['embed'][sent_words]                          # [Ns, L, E]
    ngram = conv_encode(sw_emb, params['conv_w'], params['conv_b'])   # [Ns, E]
    pos_emb = params['sent_pos_embed'][sent_pos]
    lstm_in = ngram.reshape(Nd, Ns // Nd, -1)                     # docs x sents x E
    lstm_out = bilstm(lstm_in, params['lstm']).reshape(Ns, -1)

    # cnn_proj/lstm_proj/n_feature_proj have no nonlinearity between them -> fold the
    # three linears into one fused two-matmul kernel (weights folded host-side).
    F = params['cnn_proj_w'].shape[1]
    w_top = params['n_feature_proj_w'][:F]
    w_bot = params['n_feature_proj_w'][F:]
    wa = params['cnn_proj_w'] @ w_top
    wb = params['lstm_proj_w'] @ w_bot
    fused_b = params['cnn_proj_b'] @ w_top + params['lstm_proj_b'] @ w_bot
    sent_feature = sent_feature_fused(ngram + pos_emb, wa, lstm_out, wb, fused_b)  # [Ns, H]

    # --- set_dnfeature: (doc_pool @ sent_feature) @ dn_feature_proj, one kernel -
    doc_feature = doc_feature_fused(doc_pool, sent_feature, params['dn_feature_proj_w'])

    word_state = word_feature
    sent_state = jnp.concatenate([sent_feature, doc_feature], axis=0)  # [Nsup, H]

    # --- message passing: each WSWGAT layer is ONE fused pallas_call ----------
    sent_state = wswgat(params['w2s'], word_state, sent_state,
                        bias_w2s, params['n_head_w2s'])
    for _ in range(n_iter):
        word_state = wswgat(params['s2w'], sent_state, word_state,
                            bias_s2w, params['n_head_s2w'])
        sent_state = wswgat(params['w2s'], word_state, sent_state,
                            bias_w2s, params['n_head_w2s'])

    # --- readout: concat each sentence state with its doc state ---------------
    s_hidden = sent_state[:Ns]
    d_hidden = sent_state[Ns:][doc_of_sent]
    s_state = jnp.concatenate([s_hidden, d_hidden], axis=-1)      # [Ns, 2H]
    result = linear(s_state, params['wh_w'], params['wh_b'])      # [Ns, 2]
    return result


# ----------------------------------------------------------------------------
# Deterministic parameter / input construction
# ----------------------------------------------------------------------------
def glorot(key, shape):
    fan_in, fan_out = shape[0], shape[-1]
    scale = np.sqrt(2.0 / (fan_in + fan_out))
    return (jax.random.normal(key, shape, jnp.float32) * scale).astype(jnp.float32)


if __name__ == "__main__":
    # hyper-params (hps)
    V, E, H, F, Fe = 100, 48, 32, 16, 8          # vocab, word_emb, hidden, n_feature, feat_embed
    NHEAD_W2S, NHEAD_S2W = 4, 6
    FFN = 64
    LSTM_H = 24                                  # bidirectional -> 2*24 = 48
    B, S, L = 2, 4, 8                            # docs, sents/doc, words/sent
    Ns, Nd, Nw = B * S, B, 16
    Nsup = Ns + Nd
    T = 16                                       # doc_max_timesteps
    N_ITER = 1

    key = jax.random.PRNGKey(0)
    keys = iter(jax.random.split(key, 64))
    nk = lambda: next(keys)

    params = {
        'embed': jax.random.normal(nk(), (V, E), jnp.float32) * 0.1,
        'TFembed': jax.random.normal(nk(), (10, Fe), jnp.float32) * 0.1,
        'sent_pos_embed': get_sinusoid_encoding_table(T + 1, E, padding_idx=0),
        'conv_w': glorot(nk(), (3 * E, E)),
        'conv_b': jnp.zeros((E,), jnp.float32),
        'cnn_proj_w': glorot(nk(), (E, F)),
        'cnn_proj_b': jnp.zeros((F,), jnp.float32),
        'lstm': {
            'Wih_f': glorot(nk(), (E, 4 * LSTM_H)), 'Whh_f': glorot(nk(), (LSTM_H, 4 * LSTM_H)),
            'b_f': jnp.zeros((4 * LSTM_H,), jnp.float32),
            'Wih_b': glorot(nk(), (E, 4 * LSTM_H)), 'Whh_b': glorot(nk(), (LSTM_H, 4 * LSTM_H)),
            'b_b': jnp.zeros((4 * LSTM_H,), jnp.float32),
        },
        'lstm_proj_w': glorot(nk(), (2 * LSTM_H, F)),
        'lstm_proj_b': jnp.zeros((F,), jnp.float32),
        'n_feature_proj_w': glorot(nk(), (2 * F, H)),          # bias=False
        'dn_feature_proj_w': glorot(nk(), (H, H)),             # bias=False
        'w2s': {
            'W_src': glorot(nk(), (E, H)), 'W_dst': glorot(nk(), (H, H)),
            'a_src': glorot(nk(), (NHEAD_W2S, H // NHEAD_W2S)),
            'a_dst': glorot(nk(), (NHEAD_W2S, H // NHEAD_W2S)),
            'a_edge': glorot(nk(), (NHEAD_W2S, Fe)),
            'ffn_w1': glorot(nk(), (H, FFN)), 'ffn_b1': jnp.zeros((FFN,), jnp.float32),
            'ffn_w2': glorot(nk(), (FFN, H)), 'ffn_b2': jnp.zeros((H,), jnp.float32),
            'ln_g': jnp.ones((H,), jnp.float32), 'ln_b': jnp.zeros((H,), jnp.float32),
        },
        's2w': {
            'W_src': glorot(nk(), (H, E)), 'W_dst': glorot(nk(), (E, E)),
            'a_src': glorot(nk(), (NHEAD_S2W, E // NHEAD_S2W)),
            'a_dst': glorot(nk(), (NHEAD_S2W, E // NHEAD_S2W)),
            'a_edge': glorot(nk(), (NHEAD_S2W, Fe)),
            'ffn_w1': glorot(nk(), (E, FFN)), 'ffn_b1': jnp.zeros((FFN,), jnp.float32),
            'ffn_w2': glorot(nk(), (FFN, E)), 'ffn_b2': jnp.zeros((E,), jnp.float32),
            'ln_g': jnp.ones((E,), jnp.float32), 'ln_b': jnp.zeros((E,), jnp.float32),
        },
        'wh_w': glorot(nk(), (2 * H, 2)),
        'wh_b': jnp.zeros((2,), jnp.float32),
        'n_head_w2s': NHEAD_W2S,
        'n_head_s2w': NHEAD_S2W,
    }

    # synthetic batched doc-graph (dense representation of the DGL graph)
    wid = jax.random.randint(nk(), (Nw,), 0, V)
    sent_words = jax.random.randint(nk(), (Ns, L), 0, V)
    sent_pos = jnp.tile(jnp.arange(1, S + 1), B)
    ws_mask = (jax.random.uniform(nk(), (Nw, Ns)) < 0.4).astype(jnp.float32)
    # guarantee every word touches a sentence and every sentence has a word
    ws_mask = jnp.maximum(ws_mask, jax.nn.one_hot(jnp.arange(Nw) % Ns, Ns))
    ws_tffrac = jax.random.randint(nk(), (Nw, Ns), 0, 10)
    wd_mask = ws_mask.reshape(Nw, Nd, S).max(axis=-1)           # word<->doc edges
    wd_tffrac = jax.random.randint(nk(), (Nw, Nd), 0, 10)
    doc_of_sent = jnp.repeat(jnp.arange(Nd), S)
    graph = {
        'wid': wid,
        'sent_words': sent_words,
        'sent_pos': sent_pos,
        'mask_wsup': jnp.concatenate([ws_mask, wd_mask], axis=1),
        'tffrac_wsup': jnp.concatenate([ws_tffrac, wd_tffrac], axis=1),
        'doc_pool': jax.nn.one_hot(doc_of_sent, Nd).T / S,
        'doc_of_sent': doc_of_sent,
    }

    result = hsum_doc_graph_forward(params, graph, N_ITER)
    result = jax.block_until_ready(result)
    assert result.shape == (Ns, 2), result.shape
    assert bool(jnp.all(jnp.isfinite(result)))
    # TODO(synk): dropout (attention/ffn/recurrent) omitted — eval-mode forward only.
    print("KERNEL_OK")
</pallas_src>

<mosaic_0001>
module attributes {stable_mosaic.version = 11 : i64} {
  func.func @_conv_encode_kernel(%arg0: i32, %arg1: memref<64x144xbf16, #tpu.memory_space<vmem>>, %arg2: memref<144x48xbf16, #tpu.memory_space<vmem>>, %arg3: memref<1x48xf32, #tpu.memory_space<vmem>>, %arg4: memref<8x48xf32, #tpu.memory_space<vmem>>) attributes {dimension_semantics = [#tpu.dimension_semantics<arbitrary>], iteration_bounds = array<i64: 1>, scalar_prefetch = 0 : i64, scratch_operands = 0 : i64, tpu.core_type = #tpu.core_type<tc>, window_params = [{pipeline_mode = #tpu.pipeline_mode<synchronous>, transform_indices = @transform_0, window_bounds = array<i64: 64, 144>}, {pipeline_mode = #tpu.pipeline_mode<synchronous>, transform_indices = @transform_1, window_bounds = array<i64: 144, 48>}, {pipeline_mode = #tpu.pipeline_mode<synchronous>, transform_indices = @transform_2, window_bounds = array<i64: 1, 48>}, {pipeline_mode = #tpu.pipeline_mode<synchronous>, transform_indices = @transform_3, window_bounds = array<i64: 8, 48>}]} {
    %c0 = arith.constant 0 : index
    %c0_0 = arith.constant 0 : index
    %0 = vector.load %arg1[%c0, %c0_0] : memref<64x144xbf16, #tpu.memory_space<vmem>>, vector<64x144xbf16>
    %c0_1 = arith.constant 0 : index
    %c0_2 = arith.constant 0 : index
    %1 = vector.load %arg2[%c0_1, %c0_2] : memref<144x48xbf16, #tpu.memory_space<vmem>>, vector<144x48xbf16>
    %cst = arith.constant dense<0.000000e+00> : vector<64x48xf32>
    %2 = tpu.matmul %0, %1, %cst {dimension_numbers = #tpu.dot_dimension_numbers<[1], [0], [0], [1], [0, 0, 1, 1], [], []>} : vector<64x144xbf16>, vector<144x48xbf16>, vector<64x48xf32> -> vector<64x48xf32>
    %c0_3 = arith.constant 0 : index
    %c0_4 = arith.constant 0 : index
    %3 = vector.load %arg3[%c0_3, %c0_4] : memref<1x48xf32, #tpu.memory_space<vmem>>, vector<1x48xf32>
    %4 = vector.broadcast %3 : vector<1x48xf32> to vector<64x48xf32>
    %5 = arith.addf %2, %4 : vector<64x48xf32>
    %cst_5 = arith.constant 0.000000e+00 : f32
    %6 = vector.broadcast %cst_5 : f32 to vector<64x48xf32>
    %7 = arith.maximumf %5, %6 : vector<64x48xf32>
    %8 = vector.extract_strided_slice %7 {offsets = [0, 0], sizes = [8, 48], strides = [1, 1]} : vector<64x48xf32> to vector<8x48xf32>
    %9 = vector.extract_strided_slice %7 {offsets = [8, 0], sizes = [8, 48], strides = [1, 1]} : vector<64x48xf32> to vector<8x48xf32>
    %10 = arith.maximumf %8, %9 : vector<8x48xf32>
    %11 = vector.extract_strided_slice %7 {offsets = [16, 0], sizes = [8, 48], strides = [1, 1]} : vector<64x48xf32> to vector<8x48xf32>
    %12 = arith.maximumf %10, %11 : vector<8x48xf32>
    %13 = vector.extract_strided_slice %7 {offsets = [24, 0], sizes = [8, 48], strides = [1, 1]} : vector<64x48xf32> to vector<8x48xf32>
    %14 = arith.maximumf %12, %13 : vector<8x48xf32>
    %15 = vector.extract_strided_slice %7 {offsets = [32, 0], sizes = [8, 48], strides = [1, 1]} : vector<64x48xf32> to vector<8x48xf32>
    %16 = arith.maximumf %14, %15 : vector<8x48xf32>
    %17 = vector.extract_strided_slice %7 {offsets = [40, 0], sizes = [8, 48], strides = [1, 1]} : vector<64x48xf32> to vector<8x48xf32>
    %18 = arith.maximumf %16, %17 : vector<8x48xf32>
    %19 = vector.extract_strided_slice %7 {offsets = [48, 0], sizes = [8, 48], strides = [1, 1]} : vector<64x48xf32> to vector<8x48xf32>
    %20 = arith.maximumf %18, %19 : vector<8x48xf32>
    %21 = vector.extract_strided_slice %7 {offsets = [56, 0], sizes = [8, 48], strides = [1, 1]} : vector<64x48xf32> to vector<8x48xf32>
    %22 = arith.maximumf %20, %21 : vector<8x48xf32>
    %c0_6 = arith.constant 0 : index
    %c0_7 = arith.constant 0 : index
    %23 = vector.load %arg4[%c0_6, %c0_7] : memref<8x48xf32, #tpu.memory_space<vmem>>, vector<8x48xf32>
    tpu.vector_store %arg4[%c0_6, %c0_7], %22 {strides = array<i32>} : memref<8x48xf32, #tpu.memory_space<vmem>>, vector<8x48xf32>,
    return
  }
  func.func @transform_0(%arg0: i32) -> (i32, i32) {
    %c0_i32 = arith.constant 0 : i32
    %c0_i32_0 = arith.constant 0 : i32
    %c0_i32_1 = arith.constant 0 : i32
    return %c0_i32, %c0_i32_0 : i32, i32
  }
  func.func @transform_1(%arg0: i32) -> (i32, i32) {
    %c0_i32 = arith.constant 0 : i32
    %c0_i32_0 = arith.constant 0 : i32
    %c0_i32_1 = arith.constant 0 : i32
    return %c0_i32, %c0_i32_0 : i32, i32
  }
  func.func @transform_2(%arg0: i32) -> (i32, i32) {
    %c0_i32 = arith.constant 0 : i32
    %c0_i32_0 = arith.constant 0 : i32
    %c0_i32_1 = arith.constant 0 : i32
    return %c0_i32, %c0_i32_0 : i32, i32
  }
  func.func @transform_3(%arg0: i32) -> (i32, i32) {
    %c0_i32 = arith.constant 0 : i32
    %c0_i32_0 = arith.constant 0 : i32
    %c0_i32_1 = arith.constant 0 : i32
    return %c0_i32, %c0_i32_0 : i32, i32
  }
}

</mosaic_0001>

<llo_original>
// kernel: tpu_custom_call.1
$region0: #{tpu_custom_call.1}
  #allocation0 [shape = 'u32[]', space=smem, size = 0x4, offset = 0x4, fixed_abs, tag = 'smem constant byte address 0x4 - core index']
  #allocation1 [shape = 'u32[72,128]{1,0:T(1,128)}', space=vmem, size = 0x9000, scoped, tag = 'internal scratch']
  %s0 = inlined_call_operand.vmem [shape: bf16[64,144], index: 0, kind: input, shape index: {}]
  %s1 = inlined_call_operand.vmem [shape: bf16[144,48], index: 1, kind: input, shape index: {}]
  %s2 = inlined_call_operand.vmem [shape: f32[1,48], index: 2, kind: input, shape index: {}]
  %s3 = inlined_call_operand.hbm [shape: f32[8,48], index: 3, kind: output, shape index: {}]
  %s4 = sld [smem:[#allocation0]]
  $region22: #{tpu_custom_call.1} parent=0
    _
  %s6 = ssub.s32 1, %s4
  %s7 = scalar_select 0, %s6, %s4
  $region1: #{tpu_custom_call.1} parent=0
    #allocation2 [shape = 'u8[4096]{0}', space=vmem, size = 0x1000, scoped, tag = 'output window, operand 0, single buffered']
    #allocation3 [shape = 's32[1]{0}', space=sflag, size = 0x4, scoped, tag = 'scoped memory for tpu_custom_call.1']
    %8 = vsyncpa [#allocation3], 0
    // Predicated region
    $region2: #{tpu_custom_call.1} parent=1 // pred_check
      _
    $region3: #{tpu_custom_call.1} parent=1 // pred_check_branch
      %10 = sbr.rel (0) target = $region5
    $region4: #{tpu_custom_call.1} parent=1 // pred_region
      _
    $region5: #{tpu_custom_call.1} parent=1 // pred_fallthru
      _
    // Predicated region
    $region6: #{tpu_custom_call.1} parent=1 // pred_check
      _
    $region7: #{tpu_custom_call.1} parent=1 // pred_check_branch
      %12 = sbr.rel (0) target = $region9
    $region8: #{tpu_custom_call.1} parent=1 // pred_region
      _
    $region9: #{tpu_custom_call.1} parent=1 // pred_fallthru
      _
    // Predicated region
    $region10: #{tpu_custom_call.1} parent=1 // pred_check
      _
    $region11: #{tpu_custom_call.1} parent=1 // pred_check_branch
      %14 = sbr.rel (0) target = $region13
    $region12: #{tpu_custom_call.1} parent=1 // pred_region
      _
    $region13: #{tpu_custom_call.1} parent=1 // pred_fallthru
      _
    %v16 = vld [vmem:[%s0] sm:$0xff]
    %v17 = vld [vmem:[%s0 + $0x8] sm:$0xff]
    %v18 = vld [vmem:[%s0 + $0x10] sm:$0xff]
    %v19 = vld [vmem:[%s0 + $0x18] sm:$0xff]
    %v20 = vld [vmem:[%s0 + $0x20] sm:$0xff]
    %v21 = vld [vmem:[%s0 + $0x28] sm:$0xff]
    %v22 = vld [vmem:[%s0 + $0x30] sm:$0xff]
    %v23 = vld [vmem:[%s0 + $0x38] sm:$0xff]
    %v24 = vld [vmem:[%s1] sm:$0xf]
    %v25 = vld [vmem:[%s1 + $0x4] sm:$0xf]
    %v26 = vld [vmem:[%s1 + $0x8] sm:$0xf]
    %v27 = vld [vmem:[%s1 + $0xc] sm:$0xf]
    %v28 = vld [vmem:[%s1 + $0x10] sm:$0xf]
    %v29 = vld [vmem:[%s1 + $0x14] sm:$0xf]
    %v30 = vld [vmem:[%s1 + $0x18] sm:$0xf]
    %v31 = vld [vmem:[%s1 + $0x1c] sm:$0xf]
    %v32 = vld [vmem:[%s1 + $0x20] sm:$0xf]
    %v33 = vld [vmem:[%s1 + $0x24] sm:$0xf]
    %v34 = vld [vmem:[%s1 + $0x28] sm:$0xf]
    %v35 = vld [vmem:[%s1 + $0x2c] sm:$0xf]
    %v36 = vld [vmem:[%s1 + $0x30] sm:$0xf]
    %v37 = vld [vmem:[%s1 + $0x34] sm:$0xf]
    %v38 = vld [vmem:[%s1 + $0x38] sm:$0xf]
    %v39 = vld [vmem:[%s1 + $0x3c] sm:$0xf]
    %v40 = vld [vmem:[%s1 + $0x40] sm:$0xf]
    %v41 = vld [vmem:[%s1 + $0x44] sm:$0xf]
    %v42 = vld [vmem:[%s2] sm:$0x1]
    %v44 = vperm.slane %v42, 0
    %v54 = vunpack.c.l.b16 %v16
    %v55 = vunpack.c.h.b16 %v16
    %v56 = vunpack.c.l.b16 %v17
    %v57 = vunpack.c.h.b16 %v17
    %v58 = vunpack.c.l.b16 %v18
    %v59 = vunpack.c.h.b16 %v18
    %v60 = vunpack.c.l.b16 %v19
    %v61 = vunpack.c.h.b16 %v19
    %v62 = vunpack.c.l.b16 %v20
    %v63 = vunpack.c.h.b16 %v20
    %v64 = vunpack.c.l.b16 %v21
    %v65 = vunpack.c.h.b16 %v21
    %v66 = vunpack.c.l.b16 %v22
    %v67 = vunpack.c.h.b16 %v22
    %v68 = vunpack.c.l.b16 %v23
    %v69 = vunpack.c.h.b16 %v23
    %v70 = vpack.c.b16 %v56, %v54
    %v71 = vpack.c.b16 %v57, %v55
    %v72 = vpack.c.b16 %v60, %v58
    %v73 = vpack.c.b16 %v61, %v59
    %v74 = vpack.c.b16 %v64, %v62
    %v75 = vpack.c.b16 %v65, %v63
    %v76 = vpack.c.b16 %v68, %v66
    %v77 = vpack.c.b16 %v69, %v67
    %v100 = vunpack.c.l.b16 %v24
    %v101 = vunpack.c.l.b16 %v25
    %v102 = vunpack.c.l.b16 %v26
    %v103 = vunpack.c.l.b16 %v27
    %v104 = vunpack.c.l.b16 %v28
    %v105 = vunpack.c.l.b16 %v29
    %v106 = vunpack.c.l.b16 %v30
    %v107 = vunpack.c.l.b16 %v31
    %v108 = vunpack.c.l.b16 %v32
    %v109 = vunpack.c.l.b16 %v33
    %v110 = vunpack.c.l.b16 %v34
    %v111 = vunpack.c.l.b16 %v35
    %v112 = vunpack.c.l.b16 %v36
    %v113 = vunpack.c.l.b16 %v37
    %v114 = vunpack.c.l.b16 %v38
    %v115 = vunpack.c.l.b16 %v39
    %v116 = vunpack.c.l.b16 %v40
    %v117 = vunpack.c.l.b16 %v41
    %v118 = vpack.c.b16 %v101, %v100
    %v119 = vpack.c.b16 %v103, %v102
    %v120 = vpack.c.b16 %v105, %v104
    %v121 = vpack.c.b16 %v107, %v106
    %v122 = vpack.c.b16 %v109, %v108
    %v123 = vpack.c.b16 %v111, %v110
    %v124 = vpack.c.b16 %v113, %v112
    %v125 = vpack.c.b16 %v115, %v114
    %v126 = vpack.c.b16 %v117, %v116
    %vm136 = vcmask 130048
    %v138 = vsel %vm136, %v71, 0
    %v141 = vsel %vm136, %v73, 0
    %v144 = vsel %vm136, %v75, 0
    %v147 = vsel %vm136, %v77, 0
    %149 = vmatpush.bf16.msra.mxu0 %v125
    %150 = vmatpush.bf16.msra.mxu0 %v124
    %151 = vmatpush.bf16.msra.mxu0 %v123
    %152 = vmatpush.bf16.msra.mxu0 %v122
    %153 = vmatpush.bf16.msra.mxu0 %v121
    %154 = vmatpush.bf16.msra.mxu0 %v120
    %155 = vmatpush.bf16.msra.mxu0 %v119
    %156 = vmatpush.bf16.msra.mxu0 %v118
    %157 = vmatmul.bf16.gmra.mxu0 %v70
    %v158 = vpop.f32.mrf.mxu0
    %v159 = vadd.f32 %v44, %v158
    %v160 = vpop.f32.mrf.mxu0
    %v161 = vadd.f32 %v44, %v160
    %162 = vmatmul.bf16.gmra.mxu0 %v72
    %v163 = vpop.f32.mrf.mxu0
    %v164 = vadd.f32 %v44, %v163
    %v165 = vpop.f32.mrf.mxu0
    %v166 = vadd.f32 %v44, %v165
    %167 = vmatmul.bf16.gmra.mxu0 %v74
    %v168 = vpop.f32.mrf.mxu0
    %v169 = vadd.f32 %v44, %v168
    %v170 = vpop.f32.mrf.mxu0
    %v171 = vadd.f32 %v44, %v170
    %172 = vmatmul.bf16.gmra.mxu0 %v76
    %v173 = vpop.f32.mrf.mxu0
    %v174 = vadd.f32 %v44, %v173
    %v175 = vpop.f32.mrf.mxu0
    %v176 = vadd.f32 %v44, %v175
    %177 = vdwg.mxu0
    %178 = vmatpush.bf16.msra.mxu0 0
    %179 = vmatpush.bf16.msra.mxu0 0
    %180 = vmatpush.bf16.msra.mxu0 0
    %181 = vmatpush.bf16.msra.mxu0 0
    %182 = vmatpush.bf16.msra.mxu0 0
    %183 = vmatpush.bf16.msra.mxu0 0
    %184 = vmatpush.bf16.msra.mxu0 0
    %185 = vmatpush.bf16.msra.mxu0 %v126
    %186 = vmatmul.bf16.gmra.mxu0 %v138
    %v187 = vpop.f32.mrf.mxu0
    %v188 = vadd.f32 %v159, %v187
    %v189 = vpop.f32.mrf.mxu0
    %v190 = vadd.f32 %v161, %v189
    %191 = vmatmul.bf16.gmra.mxu0 %v141
    %v192 = vpop.f32.mrf.mxu0
    %v193 = vadd.f32 %v164, %v192
    %v194 = vpop.f32.mrf.mxu0
    %v195 = vadd.f32 %v166, %v194
    %196 = vmatmul.bf16.gmra.mxu0 %v144
    %v197 = vpop.f32.mrf.mxu0
    %v198 = vadd.f32 %v169, %v197
    %v199 = vpop.f32.mrf.mxu0
    %v200 = vadd.f32 %v171, %v199
    %201 = vmatmul.bf16.gmra.mxu0 %v147
    %v202 = vpop.f32.mrf.mxu0
    %v203 = vadd.f32 %v174, %v202
    %v204 = vpop.f32.mrf.mxu0
    %v205 = vadd.f32 %v176, %v204
    %206 = vdwg.mxu0
    %v207 = vmax.f32 %v188, 0.0
    %v208 = vmax.f32 %v190, 0.0
    %v209 = vmax.f32 %v193, 0.0
    %v210 = vmax.f32 %v195, 0.0
    %v211 = vmax.f32 %v198, 0.0
    %v212 = vmax.f32 %v200, 0.0
    %v213 = vmax.f32 %v203, 0.0
    %v214 = vmax.f32 %v205, 0.0
    %v215 = vmax.f32 %v207, %v208
    %v216 = vmax.f32 %v215, %v209
    %v217 = vmax.f32 %v216, %v210
    %v218 = vmax.f32 %v217, %v211
    %v219 = vmax.f32 %v218, %v212
    %v220 = vmax.f32 %v219, %v213
    %v221 = vmax.f32 %v220, %v214
    %vm222 = vcmask 392192
    %223 = vst.msk [vmem:[#allocation2] sm:$0xff] %vm222, %v221
    // Predicated region
    $region14: #{tpu_custom_call.1} parent=1 // pred_check
      _
    $region15: #{tpu_custom_call.1} parent=1 // pred_check_branch
      %225 = sbr.rel (0) target = $region17
    $region16: #{tpu_custom_call.1} parent=1 // pred_region
      %227 = vsyncadd [#allocation3], 0
      %s229 = sshll.u32 [#allocation2], 4
      %s230 = int_to_ptr.vmem [resolvable:$true] %s229
      %s231 = sshll.u32 %s3, 4
      %s232 = int_to_ptr.hbm [resolvable:$true] %s231
      %234 = dma.vmem_to_hbm [thread:$0]  %s230, 128, %s232, [#allocation3]
    $region17: #{tpu_custom_call.1} parent=1 // pred_fallthru
      _
    // Predicated region
    $region18: #{tpu_custom_call.1} parent=1 // pred_check
      _
    $region19: #{tpu_custom_call.1} parent=1 // pred_check_branch
      %236 = sbr.rel (0) target = $region21
    $region20: #{tpu_custom_call.1} parent=1 // pred_region
      %238 = dma.done [#allocation3], 128
    $region21: #{tpu_custom_call.1} parent=1 // pred_fallthru
      _
    %239 = vsyncpa [#allocation3], 1

</llo_original>
